<compile_context>
chip_gen: v5e
topology: v5e:2x2
jax: 0.10.0
libtpu: 0.0.40
codegen_flags: <defaults>
</compile_context>

<pallas_src>
import math

import jax
import jax.numpy as jnp
from jax.experimental import pallas as pl
from jax.experimental.pallas import tpu as pltpu

_LANES = 128
# 2048-row step: 5 f32 inputs + 4 f32 + 3 int8 outputs = 39 B/row-elt
#   -> ~9.75 MiB of blocks per step, ~20.5 MiB with double buffering.
_MAX_ROW_TILE = 2048
_MIN_ROW_TILE = 256
# Explicit limit: needed on v5e (16 MiB scoped default), comfortable on
# v6e (128 MiB physical) and under v7x's 64 MiB physical VMEM.
_VMEM_LIMIT_BYTES = 48 * 1024 * 1024


def _elementwise_kernel(a_ref, b_ref, c_ref, d_ref, e_ref,
                        add_ref, sub_ref, mul_ref, div_ref,
                        gt_ref, lt_ref, eq_ref):
    a = a_ref[...]
    b = b_ref[...]
    c = c_ref[...]
    d = d_ref[...]
    e = e_ref[...]

    # Arithmetic results, written directly to their own lane-dense outputs.
    add_ref[...] = a + b                    # add
    sub_ref[...] = c - d                    # subtract
    mul_ref[...] = a * e                    # multiply
    div_ref[...] = b / (c + 1e-5)           # divide (epsilon matches PyTorch)

    # Comparison masks as int8 0/1 (Mosaic-safe; converted to bool outside).
    gt_ref[...] = (a > b).astype(jnp.int8)   # greater_than
    lt_ref[...] = (c < d).astype(jnp.int8)   # less_than
    eq_ref[...] = (e == a).astype(jnp.int8)  # equal


def _choose_tiling(rows):
    """Return (row_tile, rows_pad)."""
    if rows <= _MAX_ROW_TILE:
        # Single block == full array: exempt from the (8,128) divisibility
        # rule and avoids any input padding / output slicing.
        return rows, rows
    # Prefer the largest 32-aligned tile that divides rows exactly (no
    # padding -> outputs stay a free bitcast of the NCHW shape).
    for t in range(_MAX_ROW_TILE, _MIN_ROW_TILE - 1, -32):
        if rows % t == 0:
            return t, rows
    # Fallback: pad rows up to a multiple of the max tile.
    rows_pad = -(-rows // _MAX_ROW_TILE) * _MAX_ROW_TILE
    return _MAX_ROW_TILE, rows_pad


def _run_kernel(flat_inputs, rows_pad, row_tile):
    grid = (rows_pad // row_tile,)
    spec = pl.BlockSpec((row_tile, _LANES), lambda i: (i, 0))
    f32_out = jax.ShapeDtypeStruct((rows_pad, _LANES), jnp.float32)
    i8_out = jax.ShapeDtypeStruct((rows_pad, _LANES), jnp.int8)
    return pl.pallas_call(
        _elementwise_kernel,
        out_shape=(f32_out, f32_out, f32_out, f32_out, i8_out, i8_out, i8_out),
        grid=grid,
        in_specs=[spec] * 5,
        out_specs=(spec,) * 7,
        compiler_params=pltpu.CompilerParams(
            dimension_semantics=("parallel",),
            vmem_limit_bytes=_VMEM_LIMIT_BYTES),
    )(*flat_inputs)


@jax.jit
def pt_module_forward(i0, i1, i2, i3, i4):
    """Mirrors PtModule.forward(inputs) with inputs = [i0, i1, i2, i3, i4]."""
    orig_shape = i0.shape
    total = math.prod(orig_shape)

    rows = -(-total // _LANES)                     # ceil-div
    row_tile, rows_pad = _choose_tiling(rows)
    padded_total = rows_pad * _LANES

    def prep(x):
        # TODO(synk): for total % 128 != 0, a masked tail store in-kernel
        # would avoid this jnp.pad copy; typical NCHW sizes skip it entirely.
        xf = x.reshape(-1).astype(jnp.float32)
        if padded_total != total:
            xf = jnp.pad(xf, (0, padded_total - total))
        return xf.reshape(rows_pad, _LANES)

    flat = [prep(x) for x in (i0, i1, i2, i3, i4)]
    add, sub, mul, div, gt, lt, eq = _run_kernel(flat, rows_pad, row_tile)

    def unflat(x, to_bool=False):
        if padded_total != total:
            x = x.reshape(-1)[:total]
        x = x.reshape(orig_shape)          # free bitcast when no padding
        return x.astype(jnp.bool_) if to_bool else x

    return {
        'add': unflat(add),
        'subtract': unflat(sub),
        'multiply': unflat(mul),
        'divide': unflat(div),
        'greater_than': unflat(gt, True),
        'less_than': unflat(lt, True),
        'equal': unflat(eq, True),
    }


if __name__ == "__main__":
    key = jax.random.PRNGKey(0)
    keys = jax.random.split(key, 5)
    shape = (2, 4, 16, 16)  # N, C, H, W
    inputs = [jax.random.normal(k, shape, dtype=jnp.float32) for k in keys]

    results = pt_module_forward(*inputs)
    jax.block_until_ready(results)

    # Pure-JAX reference with identical semantics to the PyTorch module.
    ref = {
        'add': inputs[0] + inputs[1],
        'subtract': inputs[2] - inputs[3],
        'multiply': inputs[0] * inputs[4],
        'divide': inputs[1] / (inputs[2] + 1e-5),
        'greater_than': inputs[0] > inputs[1],
        'less_than': inputs[2] < inputs[3],
        'equal': inputs[4] == inputs[0],
    }
    for k in ref:
        if ref[k].dtype == jnp.bool_:
            assert results[k].dtype == jnp.bool_, k
            assert bool(jnp.all(results[k] == ref[k])), k
        else:
            assert bool(jnp.allclose(results[k], ref[k], rtol=1e-6, atol=1e-6)), k

    print("KERNEL_OK")
</pallas_src>

<mosaic_0001>
module attributes {stable_mosaic.version = 11 : i64} {
  func.func @_elementwise_kernel(%arg0: i32, %arg1: memref<16x128xf32, #tpu.memory_space<vmem>>, %arg2: memref<16x128xf32, #tpu.memory_space<vmem>>, %arg3: memref<16x128xf32, #tpu.memory_space<vmem>>, %arg4: memref<16x128xf32, #tpu.memory_space<vmem>>, %arg5: memref<16x128xf32, #tpu.memory_space<vmem>>, %arg6: memref<16x128xf32, #tpu.memory_space<vmem>>, %arg7: memref<16x128xf32, #tpu.memory_space<vmem>>, %arg8: memref<16x128xf32, #tpu.memory_space<vmem>>, %arg9: memref<16x128xf32, #tpu.memory_space<vmem>>, %arg10: memref<16x128xi8, #tpu.memory_space<vmem>>, %arg11: memref<16x128xi8, #tpu.memory_space<vmem>>, %arg12: memref<16x128xi8, #tpu.memory_space<vmem>>) attributes {dimension_semantics = [#tpu.dimension_semantics<parallel>], iteration_bounds = array<i64: 1>, scalar_prefetch = 0 : i64, scratch_operands = 0 : i64, tpu.core_type = #tpu.core_type<tc>, window_params = [{transform_indices = @transform_0, window_bounds = array<i64: 16, 128>}, {transform_indices = @transform_1, window_bounds = array<i64: 16, 128>}, {transform_indices = @transform_2, window_bounds = array<i64: 16, 128>}, {transform_indices = @transform_3, window_bounds = array<i64: 16, 128>}, {transform_indices = @transform_4, window_bounds = array<i64: 16, 128>}, {transform_indices = @transform_5, window_bounds = array<i64: 16, 128>}, {transform_indices = @transform_6, window_bounds = array<i64: 16, 128>}, {transform_indices = @transform_7, window_bounds = array<i64: 16, 128>}, {transform_indices = @transform_8, window_bounds = array<i64: 16, 128>}, {transform_indices = @transform_9, window_bounds = array<i64: 16, 128>}, {transform_indices = @transform_10, window_bounds = array<i64: 16, 128>}, {transform_indices = @transform_11, window_bounds = array<i64: 16, 128>}]} {
    %c0 = arith.constant 0 : index
    %c0_0 = arith.constant 0 : index
    %0 = vector.load %arg1[%c0, %c0_0] : memref<16x128xf32, #tpu.memory_space<vmem>>, vector<16x128xf32>
    %c0_1 = arith.constant 0 : index
    %c0_2 = arith.constant 0 : index
    %1 = vector.load %arg2[%c0_1, %c0_2] : memref<16x128xf32, #tpu.memory_space<vmem>>, vector<16x128xf32>
    %c0_3 = arith.constant 0 : index
    %c0_4 = arith.constant 0 : index
    %2 = vector.load %arg3[%c0_3, %c0_4] : memref<16x128xf32, #tpu.memory_space<vmem>>, vector<16x128xf32>
    %c0_5 = arith.constant 0 : index
    %c0_6 = arith.constant 0 : index
    %3 = vector.load %arg4[%c0_5, %c0_6] : memref<16x128xf32, #tpu.memory_space<vmem>>, vector<16x128xf32>
    %c0_7 = arith.constant 0 : index
    %c0_8 = arith.constant 0 : index
    %4 = vector.load %arg5[%c0_7, %c0_8] : memref<16x128xf32, #tpu.memory_space<vmem>>, vector<16x128xf32>
    %5 = arith.addf %0, %1 : vector<16x128xf32>
    %c0_9 = arith.constant 0 : index
    %c0_10 = arith.constant 0 : index
    %6 = vector.load %arg6[%c0_9, %c0_10] : memref<16x128xf32, #tpu.memory_space<vmem>>, vector<16x128xf32>
    tpu.vector_store %arg6[%c0_9, %c0_10], %5 {strides = array<i32>} : memref<16x128xf32, #tpu.memory_space<vmem>>, vector<16x128xf32>,
    %7 = arith.subf %2, %3 : vector<16x128xf32>
    %c0_11 = arith.constant 0 : index
    %c0_12 = arith.constant 0 : index
    %8 = vector.load %arg7[%c0_11, %c0_12] : memref<16x128xf32, #tpu.memory_space<vmem>>, vector<16x128xf32>
    tpu.vector_store %arg7[%c0_11, %c0_12], %7 {strides = array<i32>} : memref<16x128xf32, #tpu.memory_space<vmem>>, vector<16x128xf32>,
    %9 = arith.mulf %0, %4 : vector<16x128xf32>
    %c0_13 = arith.constant 0 : index
    %c0_14 = arith.constant 0 : index
    %10 = vector.load %arg8[%c0_13, %c0_14] : memref<16x128xf32, #tpu.memory_space<vmem>>, vector<16x128xf32>
    tpu.vector_store %arg8[%c0_13, %c0_14], %9 {strides = array<i32>} : memref<16x128xf32, #tpu.memory_space<vmem>>, vector<16x128xf32>,
    %cst = arith.constant 9.99999974E-6 : f32
    %11 = vector.broadcast %cst : f32 to vector<16x128xf32>
    %12 = arith.addf %2, %11 : vector<16x128xf32>
    %13 = arith.divf %1, %12 : vector<16x128xf32>
    %c0_15 = arith.constant 0 : index
    %c0_16 = arith.constant 0 : index
    %14 = vector.load %arg9[%c0_15, %c0_16] : memref<16x128xf32, #tpu.memory_space<vmem>>, vector<16x128xf32>
    tpu.vector_store %arg9[%c0_15, %c0_16], %13 {strides = array<i32>} : memref<16x128xf32, #tpu.memory_space<vmem>>, vector<16x128xf32>,
    %15 = arith.cmpf ogt, %0, %1 : vector<16x128xf32>
    %16 = arith.extui %15 : vector<16x128xi1> to vector<16x128xi8>
    %c0_17 = arith.constant 0 : index
    %c0_18 = arith.constant 0 : index
    %17 = vector.load %arg10[%c0_17, %c0_18] : memref<16x128xi8, #tpu.memory_space<vmem>>, vector<16x128xi8>
    tpu.vector_store %arg10[%c0_17, %c0_18], %16 {strides = array<i32>} : memref<16x128xi8, #tpu.memory_space<vmem>>, vector<16x128xi8>,
    %18 = arith.cmpf olt, %2, %3 : vector<16x128xf32>
    %19 = arith.extui %18 : vector<16x128xi1> to vector<16x128xi8>
    %c0_19 = arith.constant 0 : index
    %c0_20 = arith.constant 0 : index
    %20 = vector.load %arg11[%c0_19, %c0_20] : memref<16x128xi8, #tpu.memory_space<vmem>>, vector<16x128xi8>
    tpu.vector_store %arg11[%c0_19, %c0_20], %19 {strides = array<i32>} : memref<16x128xi8, #tpu.memory_space<vmem>>, vector<16x128xi8>,
    %21 = arith.cmpf oeq, %4, %0 : vector<16x128xf32>
    %22 = arith.extui %21 : vector<16x128xi1> to vector<16x128xi8>
    %c0_21 = arith.constant 0 : index
    %c0_22 = arith.constant 0 : index
    %23 = vector.load %arg12[%c0_21, %c0_22] : memref<16x128xi8, #tpu.memory_space<vmem>>, vector<16x128xi8>
    tpu.vector_store %arg12[%c0_21, %c0_22], %22 {strides = array<i32>} : memref<16x128xi8, #tpu.memory_space<vmem>>, vector<16x128xi8>,
    return
  }
  func.func @transform_0(%arg0: i32) -> (i32, i32) {
    %c0_i32 = arith.constant 0 : i32
    %c0_i32_0 = arith.constant 0 : i32
    return %arg0, %c0_i32 : i32, i32
  }
  func.func @transform_1(%arg0: i32) -> (i32, i32) {
    %c0_i32 = arith.constant 0 : i32
    %c0_i32_0 = arith.constant 0 : i32
    return %arg0, %c0_i32 : i32, i32
  }
  func.func @transform_2(%arg0: i32) -> (i32, i32) {
    %c0_i32 = arith.constant 0 : i32
    %c0_i32_0 = arith.constant 0 : i32
    return %arg0, %c0_i32 : i32, i32
  }
  func.func @transform_3(%arg0: i32) -> (i32, i32) {
    %c0_i32 = arith.constant 0 : i32
    %c0_i32_0 = arith.constant 0 : i32
    return %arg0, %c0_i32 : i32, i32
  }
  func.func @transform_4(%arg0: i32) -> (i32, i32) {
    %c0_i32 = arith.constant 0 : i32
    %c0_i32_0 = arith.constant 0 : i32
    return %arg0, %c0_i32 : i32, i32
  }
  func.func @transform_5(%arg0: i32) -> (i32, i32) {
    %c0_i32 = arith.constant 0 : i32
    %c0_i32_0 = arith.constant 0 : i32
    return %arg0, %c0_i32 : i32, i32
  }
  func.func @transform_6(%arg0: i32) -> (i32, i32) {
    %c0_i32 = arith.constant 0 : i32
    %c0_i32_0 = arith.constant 0 : i32
    return %arg0, %c0_i32 : i32, i32
  }
  func.func @transform_7(%arg0: i32) -> (i32, i32) {
    %c0_i32 = arith.constant 0 : i32
    %c0_i32_0 = arith.constant 0 : i32
    return %arg0, %c0_i32 : i32, i32
  }
  func.func @transform_8(%arg0: i32) -> (i32, i32) {
    %c0_i32 = arith.constant 0 : i32
    %c0_i32_0 = arith.constant 0 : i32
    return %arg0, %c0_i32 : i32, i32
  }
  func.func @transform_9(%arg0: i32) -> (i32, i32) {
    %c0_i32 = arith.constant 0 : i32
    %c0_i32_0 = arith.constant 0 : i32
    return %arg0, %c0_i32 : i32, i32
  }
  func.func @transform_10(%arg0: i32) -> (i32, i32) {
    %c0_i32 = arith.constant 0 : i32
    %c0_i32_0 = arith.constant 0 : i32
    return %arg0, %c0_i32 : i32, i32
  }
  func.func @transform_11(%arg0: i32) -> (i32, i32) {
    %c0_i32 = arith.constant 0 : i32
    %c0_i32_0 = arith.constant 0 : i32
    return %arg0, %c0_i32 : i32, i32
  }
}

</mosaic_0001>

<llo_original>
// kernel: pt_module_forward.1
$region0: #{pt_module_forward.1}
  #allocation0 [shape = 'u32[]', space=smem, size = 0x4, offset = 0x4, fixed_abs, tag = 'smem constant byte address 0x4 - core index']
  #allocation1 [shape = 'u32[72,128]{1,0:T(1,128)}', space=vmem, size = 0x9000, scoped, tag = 'internal scratch']
  %s0 = inlined_call_operand.vmem [shape: f32[16,128], index: 0, kind: input, shape index: {}]
  %s1 = inlined_call_operand.vmem [shape: f32[16,128], index: 1, kind: input, shape index: {}]
  %s2 = inlined_call_operand.vmem [shape: f32[16,128], index: 2, kind: input, shape index: {}]
  %s3 = inlined_call_operand.vmem [shape: f32[16,128], index: 3, kind: input, shape index: {}]
  %s4 = inlined_call_operand.vmem [shape: f32[16,128], index: 4, kind: input, shape index: {}]
  %s5 = inlined_call_operand.vmem [shape: f32[16,128], index: 5, kind: output, shape index: {0}]
  %s6 = inlined_call_operand.vmem [shape: f32[16,128], index: 6, kind: output, shape index: {1}]
  %s7 = inlined_call_operand.vmem [shape: f32[16,128], index: 7, kind: output, shape index: {2}]
  %s8 = inlined_call_operand.vmem [shape: f32[16,128], index: 8, kind: output, shape index: {3}]
  %s9 = inlined_call_operand.vmem [shape: s8[16,128], index: 9, kind: output, shape index: {4}]
  %s10 = inlined_call_operand.vmem [shape: s8[16,128], index: 10, kind: output, shape index: {5}]
  %s11 = inlined_call_operand.vmem [shape: s8[16,128], index: 11, kind: output, shape index: {6}]
  %12 = xla_tuple %s5, %s6, %s7, %s8, %s9, %s10, %s11
  %s13 = sld [smem:[#allocation0]]
  $region78: #{pt_module_forward.1} parent=0
    _
  %s15 = ssub.s32 1, %s13
  %s16 = scalar_select 0, %s15, %s13
  // Predicated region
  $region2: #{pt_module_forward.1} parent=0 // pred_check
    _
  $region3: #{pt_module_forward.1} parent=0 // pred_check_branch
    %18 = sbr.rel (0) target = $region5
  $region4: #{pt_module_forward.1} parent=0 // pred_region
    _
  $region5: #{pt_module_forward.1} parent=0 // pred_fallthru
    _
  // Predicated region
  $region6: #{pt_module_forward.1} parent=0 // pred_check
    _
  $region7: #{pt_module_forward.1} parent=0 // pred_check_branch
    %20 = sbr.rel (0) target = $region9
  $region8: #{pt_module_forward.1} parent=0 // pred_region
    _
  $region9: #{pt_module_forward.1} parent=0 // pred_fallthru
    _
  // Predicated region
  $region10: #{pt_module_forward.1} parent=0 // pred_check
    _
  $region11: #{pt_module_forward.1} parent=0 // pred_check_branch
    %22 = sbr.rel (0) target = $region13
  $region12: #{pt_module_forward.1} parent=0 // pred_region
    _
  $region13: #{pt_module_forward.1} parent=0 // pred_fallthru
    _
  // Predicated region
  $region14: #{pt_module_forward.1} parent=0 // pred_check
    _
  $region15: #{pt_module_forward.1} parent=0 // pred_check_branch
    %24 = sbr.rel (0) target = $region17
  $region16: #{pt_module_forward.1} parent=0 // pred_region
    _
  $region17: #{pt_module_forward.1} parent=0 // pred_fallthru
    _
  // Predicated region
  $region18: #{pt_module_forward.1} parent=0 // pred_check
    _
  $region19: #{pt_module_forward.1} parent=0 // pred_check_branch
    %26 = sbr.rel (0) target = $region21
  $region20: #{pt_module_forward.1} parent=0 // pred_region
    _
  $region21: #{pt_module_forward.1} parent=0 // pred_fallthru
    _
  %v29 = vld [vmem:[%s0] sm:$0xff]
  %v30 = vld [vmem:[%s0 + $0x8] sm:$0xff]
  %v31 = vld [vmem:[%s1] sm:$0xff]
  %v32 = vld [vmem:[%s1 + $0x8] sm:$0xff]
  %v33 = vld [vmem:[%s2] sm:$0xff]
  %v34 = vld [vmem:[%s2 + $0x8] sm:$0xff]
  %v35 = vld [vmem:[%s3] sm:$0xff]
  %v36 = vld [vmem:[%s3 + $0x8] sm:$0xff]
  %v37 = vld [vmem:[%s4] sm:$0xff]
  %v38 = vld [vmem:[%s4 + $0x8] sm:$0xff]
  %v39 = vadd.f32 %v29, %v31
  %v40 = vadd.f32 %v30, %v32
  %41 = vst [vmem:[%s5] sm:$0xff] %v39
  %42 = vst [vmem:[%s5 + $0x8] sm:$0xff] %v40
  %v43 = vsub.f32 %v33, %v35
  %v44 = vsub.f32 %v34, %v36
  %45 = vst [vmem:[%s6] sm:$0xff] %v43
  %46 = vst [vmem:[%s6 + $0x8] sm:$0xff] %v44
  %v47 = vmul.f32 %v29, %v37
  %v48 = vmul.f32 %v30, %v38
  %49 = vst [vmem:[%s7] sm:$0xff] %v47
  %50 = vst [vmem:[%s7 + $0x8] sm:$0xff] %v48
  %v51 = vadd.f32 %v33, 1e-05
  %v52 = vadd.f32 %v34, 1e-05
  %v53 = vrcp.pop %v51
  %v54 = vmul.f32 %v51, %v53
  %v55 = vsub.f32 1.0, %v54
  %v56 = vmul.f32 %v53, %v55
  %v57 = vadd.f32 %v53, %v56
  %vm58 = vweird.f32 %v51
  %vm59 = vweird.f32 %v53
  %vm60 = vmor %vm58, %vm59
  %v61 = vsel %vm60, %v53, %v57
  %v62 = vand.u32 2147483647, %v51
  %vm63 = vcmp.eq.f32.partialorder %v62, 8.507059e+37
  %v64 = vand.u32 %v51, 2147483648
  %v65 = vor.u32 1.1754944e-38, %v64
  %v66 = vsel %vm63, %v65, %v61
  %v67 = vmul.f32 %v31, %v66
  %v68 = vrcp.pop %v52
  %v69 = vmul.f32 %v52, %v68
  %v70 = vsub.f32 1.0, %v69
  %v71 = vmul.f32 %v68, %v70
  %v72 = vadd.f32 %v68, %v71
  %vm73 = vweird.f32 %v52
  %vm74 = vweird.f32 %v68
  %vm75 = vmor %vm73, %vm74
  %v76 = vsel %vm75, %v68, %v72
  %v77 = vand.u32 2147483647, %v52
  %vm78 = vcmp.eq.f32.partialorder %v77, 8.507059e+37
  %v79 = vand.u32 %v52, 2147483648
  %v80 = vor.u32 1.1754944e-38, %v79
  %v81 = vsel %vm78, %v80, %v76
  %v82 = vmul.f32 %v32, %v81
  %83 = vst [vmem:[%s8] sm:$0xff] %v67
  %84 = vst [vmem:[%s8 + $0x8] sm:$0xff] %v82
  %vm85 = vcmp.gt.f32.partialorder %v29, %v31
  %vm86 = vcmp.gt.f32.partialorder %v30, %v32
  %vm87 = vmpackc.low %vm86, %vm85
  %v88 = vsel %vm87, 16711935, 0
  %v89 = vsel %vm87, 16711935, 0
  %v90 = vpack.c.b8 %v89, %v88
  %vm91 = vnez %v90
  %v92 = vsel %vm91, 16843009, 0
  %v93 = vunpack.c.0.s8 %v92
  %v94 = vunpack.c.1.s8 %v92
  %v95 = vpack.c.b16 %v93, %v93
  %v96 = vpack.c.b8 %v95, %v95
  %v97 = vpack.c.b16 %v94, %v94
  %v98 = vpack.c.b8 %v97, %v97
  %99 = vst [vmem:[%s9] sm:$0x3] %v96
  %100 = vst [vmem:[%s9 + $0x2] sm:$0x3] %v98
  %vm101 = vcmp.lt.f32.partialorder %v33, %v35
  %vm102 = vcmp.lt.f32.partialorder %v34, %v36
  %vm103 = vmpackc.low %vm102, %vm101
  %v104 = vsel %vm103, 16711935, 0
  %v105 = vsel %vm103, 16711935, 0
  %v106 = vpack.c.b8 %v105, %v104
  %vm107 = vnez %v106
  %v108 = vsel %vm107, 16843009, 0
  %v109 = vunpack.c.0.s8 %v108
  %v110 = vunpack.c.1.s8 %v108
  %v111 = vpack.c.b16 %v109, %v109
  %v112 = vpack.c.b8 %v111, %v111
  %v113 = vpack.c.b16 %v110, %v110
  %v114 = vpack.c.b8 %v113, %v113
  %115 = vst [vmem:[%s10] sm:$0x3] %v112
  %116 = vst [vmem:[%s10 + $0x2] sm:$0x3] %v114
  %vm117 = vcmp.eq.f32.partialorder %v37, %v29
  %vm118 = vcmp.eq.f32.partialorder %v38, %v30
  %vm119 = vmpackc.low %vm118, %vm117
  %v120 = vsel %vm119, 16711935, 0
  %v121 = vsel %vm119, 16711935, 0
  %v122 = vpack.c.b8 %v121, %v120
  %vm123 = vnez %v122
  %v124 = vsel %vm123, 16843009, 0
  %v125 = vunpack.c.0.s8 %v124
  %v126 = vunpack.c.1.s8 %v124
  %v127 = vpack.c.b16 %v125, %v125
  %v128 = vpack.c.b8 %v127, %v127
  %v129 = vpack.c.b16 %v126, %v126
  %v130 = vpack.c.b8 %v129, %v129
  %131 = vst [vmem:[%s11] sm:$0x3] %v128
  %132 = vst [vmem:[%s11 + $0x2] sm:$0x3] %v130
  // Predicated region
  $region22: #{pt_module_forward.1} parent=0 // pred_check
    _
  $region23: #{pt_module_forward.1} parent=0 // pred_check_branch
    %134 = sbr.rel (0) target = $region25
  $region24: #{pt_module_forward.1} parent=0 // pred_region
    _
  $region25: #{pt_module_forward.1} parent=0 // pred_fallthru
    _
  // Predicated region
  $region26: #{pt_module_forward.1} parent=0 // pred_check
    _
  $region27: #{pt_module_forward.1} parent=0 // pred_check_branch
    %136 = sbr.rel (0) target = $region29
  $region28: #{pt_module_forward.1} parent=0 // pred_region
    _
  $region29: #{pt_module_forward.1} parent=0 // pred_fallthru
    _
  // Predicated region
  $region30: #{pt_module_forward.1} parent=0 // pred_check
    _
  $region31: #{pt_module_forward.1} parent=0 // pred_check_branch
    %138 = sbr.rel (0) target = $region33
  $region32: #{pt_module_forward.1} parent=0 // pred_region
    _
  $region33: #{pt_module_forward.1} parent=0 // pred_fallthru
    _
  // Predicated region
  $region34: #{pt_module_forward.1} parent=0 // pred_check
    _
  $region35: #{pt_module_forward.1} parent=0 // pred_check_branch
    %140 = sbr.rel (0) target = $region37
  $region36: #{pt_module_forward.1} parent=0 // pred_region
    _
  $region37: #{pt_module_forward.1} parent=0 // pred_fallthru
    _
  // Predicated region
  $region38: #{pt_module_forward.1} parent=0 // pred_check
    _
  $region39: #{pt_module_forward.1} parent=0 // pred_check_branch
    %142 = sbr.rel (0) target = $region41
  $region40: #{pt_module_forward.1} parent=0 // pred_region
    _
  $region41: #{pt_module_forward.1} parent=0 // pred_fallthru
    _
  // Predicated region
  $region42: #{pt_module_forward.1} parent=0 // pred_check
    _
  $region43: #{pt_module_forward.1} parent=0 // pred_check_branch
    %144 = sbr.rel (0) target = $region45
  $region44: #{pt_module_forward.1} parent=0 // pred_region
    _
  $region45: #{pt_module_forward.1} parent=0 // pred_fallthru
    _
  // Predicated region
  $region46: #{pt_module_forward.1} parent=0 // pred_check
    _
  $region47: #{pt_module_forward.1} parent=0 // pred_check_branch
    %146 = sbr.rel (0) target = $region49
  $region48: #{pt_module_forward.1} parent=0 // pred_region
    _
  $region49: #{pt_module_forward.1} parent=0 // pred_fallthru
    _
  // Predicated region
  $region50: #{pt_module_forward.1} parent=0 // pred_check
    _
  $region51: #{pt_module_forward.1} parent=0 // pred_check_branch
    %148 = sbr.rel (0) target = $region53
  $region52: #{pt_module_forward.1} parent=0 // pred_region
    _
  $region53: #{pt_module_forward.1} parent=0 // pred_fallthru
    _
  // Predicated region
  $region54: #{pt_module_forward.1} parent=0 // pred_check
    _
  $region55: #{pt_module_forward.1} parent=0 // pred_check_branch
    %150 = sbr.rel (0) target = $region57
  $region56: #{pt_module_forward.1} parent=0 // pred_region
    _
  $region57: #{pt_module_forward.1} parent=0 // pred_fallthru
    _
  // Predicated region
  $region58: #{pt_module_forward.1} parent=0 // pred_check
    _
  $region59: #{pt_module_forward.1} parent=0 // pred_check_branch
    %152 = sbr.rel (0) target = $region61
  $region60: #{pt_module_forward.1} parent=0 // pred_region
    _
  $region61: #{pt_module_forward.1} parent=0 // pred_fallthru
    _
  // Predicated region
  $region62: #{pt_module_forward.1} parent=0 // pred_check
    _
  $region63: #{pt_module_forward.1} parent=0 // pred_check_branch
    %154 = sbr.rel (0) target = $region65
  $region64: #{pt_module_forward.1} parent=0 // pred_region
    _
  $region65: #{pt_module_forward.1} parent=0 // pred_fallthru
    _
  // Predicated region
  $region66: #{pt_module_forward.1} parent=0 // pred_check
    _
  $region67: #{pt_module_forward.1} parent=0 // pred_check_branch
    %156 = sbr.rel (0) target = $region69
  $region68: #{pt_module_forward.1} parent=0 // pred_region
    _
  $region69: #{pt_module_forward.1} parent=0 // pred_fallthru
    _
  // Predicated region
  $region70: #{pt_module_forward.1} parent=0 // pred_check
    _
  $region71: #{pt_module_forward.1} parent=0 // pred_check_branch
    %158 = sbr.rel (0) target = $region73
  $region72: #{pt_module_forward.1} parent=0 // pred_region
    _
  $region73: #{pt_module_forward.1} parent=0 // pred_fallthru
    _
  // Predicated region
  $region74: #{pt_module_forward.1} parent=0 // pred_check
    _
  $region75: #{pt_module_forward.1} parent=0 // pred_check_branch
    %160 = sbr.rel (0) target = $region77
  $region76: #{pt_module_forward.1} parent=0 // pred_region
    _
  $region77: #{pt_module_forward.1} parent=0 // pred_fallthru
    _

</llo_original>
